<compile_context>
chip_gen: v5e
topology: v5e:2x2
jax: 0.10.0
libtpu: 0.0.40
codegen_flags: <defaults>
</compile_context>

<pallas_src>
from functools import partial

import jax
import jax.numpy as jnp
from jax.experimental import pallas as pl
from jax.experimental.pallas import tpu as pltpu


def _round_up(v: int, m: int) -> int:
    return (v + m - 1) // m * m


def _binary_head_kernel(x_ref, cf_ref, pred_ref):
    """C == 2 fast path.

    x_ref:    (2, RT, 128) logits in native dtype (classes on the leading axis)
    cf_ref:   (RT, 128)    float32 certainty == softmax(x, classes)[class 1]
    pred_ref: (RT, 128)    int8 argmax over classes
    """
    x0 = x_ref[0].astype(jnp.float32)
    x1 = x_ref[1].astype(jnp.float32)
    d = x1 - x0
    # softmax(x, axis=classes)[1] == sigmoid(x1 - x0) exactly when C == 2.
    cf_ref[...] = jax.nn.sigmoid(d)
    # torch.argmax semantics: NaN counts as the maximum, first occurrence wins.
    nan0 = jnp.isnan(x0)
    nan1 = jnp.isnan(x1)
    take1 = jnp.logical_and(jnp.logical_not(nan0),
                            jnp.logical_or(nan1, x1 > x0))
    pred_ref[...] = take1.astype(pred_ref.dtype)


def _general_head_kernel(x_ref, cf_ref, pred_ref):
    """General C >= 2 fallback.  x_ref: (C, RT, 128); reduce over class axis 0."""
    x = x_ref[...].astype(jnp.float32)
    m = jnp.max(x, axis=0, keepdims=True)
    e = jnp.exp(x - m)
    denom = jnp.sum(e, axis=0)
    # HBM-bound kernel: the exact divide is free; no approx reciprocal needed.
    cf_ref[...] = e[1] / denom
    # argmax: first-occurrence tie-break, NaN treated as maximum (torch semantics).
    idx = jax.lax.broadcasted_iota(jnp.int32, x.shape, 0)
    is_max = jnp.logical_or(x == m, jnp.isnan(x))
    pred_ref[...] = jnp.min(
        jnp.where(is_max, idx, jnp.int32(x.shape[0])), axis=0
    ).astype(pred_ref.dtype)


@partial(jax.jit, static_argnames=("tile_rows", "classes_first"))
def test_head(logits, *, tile_rows: int = 4096, classes_first: bool = False):
    """Pallas implementation of TrainingModelBase.test()'s head math.

      certainty_factor == softmax(logits, class axis)[:, 1]
      prediction       == argmax(logits, class axis)

    Args:
      logits: (batch, num_classes) array in the module's native layout, or
              (num_classes, batch) when classes_first=True (skips the wrapper
              transpose — the only full wrapper-side HBM relayout pass).
      tile_rows: sublane rows (x 128 lanes) per grid step.
      classes_first: True if logits are already class-major.
    Returns:
      certainty_factor: (batch,) float32
      prediction:       (batch,) int8 for the binary head, int32 otherwise.
    """
    x = logits if classes_first else jnp.transpose(logits)   # (C, B), native dtype
    C, B = x.shape
    if C < 2:
        raise ValueError("test() head assumes num_classes >= 2")

    # Round batch up to the 128-lane boundary only; this tiny pad fuses with the
    # relayout above under jit.  All other raggedness is handled by the grid.
    b128 = _round_up(B, 128)
    if b128 != B:
        x = jnp.pad(x, ((0, 0), (0, b128 - B)))
    rows = b128 // 128
    x = x.reshape(C, rows, 128)        # sublane-dense: (class, sublane-row, lane)

    # Tile the row axis.  Keep rt a multiple of 32 so bf16/int8 blocks stay
    # tileable, and force >= 2 grid steps when there is enough work so the
    # "parallel" axis can be sharded across v7x's two TensorCores.
    tile_rows = max(32, _round_up(tile_rows, 32))
    if rows > tile_rows:
        rt = tile_rows
    elif rows >= 64:
        rt = _round_up(pl.cdiv(rows, 2), 32)
    else:
        rt = rows                      # single small block (full-dim escape)
    grid = (pl.cdiv(rows, rt),)

    if C == 2:
        kernel, pred_dtype = _binary_head_kernel, jnp.int8
    else:
        kernel, pred_dtype = _general_head_kernel, jnp.int32

    cf, pred = pl.pallas_call(
        kernel,
        out_shape=(
            jax.ShapeDtypeStruct((rows, 128), jnp.float32),
            jax.ShapeDtypeStruct((rows, 128), pred_dtype),
        ),
        grid_spec=pltpu.PrefetchScalarGridSpec(
            num_scalar_prefetch=0,
            grid=grid,
            in_specs=[pl.BlockSpec((C, rt, 128), lambda i: (0, i, 0))],
            out_specs=[
                pl.BlockSpec((rt, 128), lambda i: (i, 0)),
                pl.BlockSpec((rt, 128), lambda i: (i, 0)),
            ],
        ),
        compiler_params=pltpu.CompilerParams(
            dimension_semantics=("parallel",),
            vmem_limit_bytes=32 * 1024 * 1024,
        ),
    )(x)
    return cf.reshape(-1)[:B], pred.reshape(-1)[:B]


if __name__ == "__main__":
    key = jax.random.PRNGKey(0)
    k1, k2 = jax.random.split(key, 2)

    # --- documented binary head: (batch, 2) float32 ------------------------
    batch, num_classes = 8, 2
    logits = jax.random.normal(k1, (batch, num_classes), dtype=jnp.float32)
    cf, pred = test_head(logits)
    jax.block_until_ready((cf, pred))
    ref_cf = jax.nn.softmax(logits, axis=1)[:, 1]
    ref_pred = jnp.argmax(logits, axis=1).astype(jnp.int32)
    assert jnp.allclose(cf, ref_cf, atol=1e-5), (cf, ref_cf)
    assert jnp.array_equal(pred.astype(jnp.int32), ref_pred), (pred, ref_pred)

    # --- native-dtype streaming: bf16 logits, no wrapper cast --------------
    logits_bf16 = logits.astype(jnp.bfloat16)
    cf_b, pred_b = test_head(logits_bf16)
    jax.block_until_ready((cf_b, pred_b))
    ref_cf_b = jax.nn.softmax(logits_bf16.astype(jnp.float32), axis=1)[:, 1]
    ref_pred_b = jnp.argmax(logits_bf16, axis=1).astype(jnp.int32)
    assert jnp.allclose(cf_b, ref_cf_b, atol=2e-2), (cf_b, ref_cf_b)
    assert jnp.array_equal(pred_b.astype(jnp.int32), ref_pred_b), (pred_b, ref_pred_b)

    # --- class-major producer path (transpose skipped) ----------------------
    cf_t, pred_t = test_head(jnp.transpose(logits), classes_first=True)
    jax.block_until_ready((cf_t, pred_t))
    assert jnp.allclose(cf_t, ref_cf, atol=1e-5), (cf_t, ref_cf)
    assert jnp.array_equal(pred_t.astype(jnp.int32), ref_pred), (pred_t, ref_pred)

    # --- general fallback path (C != 2), exact divide -----------------------
    logits4 = jax.random.normal(k2, (16, 4), dtype=jnp.float32)
    cf4, pred4 = test_head(logits4)
    jax.block_until_ready((cf4, pred4))
    ref_cf4 = jax.nn.softmax(logits4, axis=1)[:, 1]
    ref_pred4 = jnp.argmax(logits4, axis=1).astype(jnp.int32)
    assert jnp.allclose(cf4, ref_cf4, atol=1e-5, rtol=1e-5), (cf4, ref_cf4)
    assert jnp.array_equal(pred4, ref_pred4), (pred4, ref_pred4)

    print("KERNEL_OK")
</pallas_src>

<mosaic_0001>
module attributes {stable_mosaic.version = 11 : i64} {
  func.func @_binary_head_kernel(%arg0: i32, %arg1: memref<2x1x128xf32, #tpu.memory_space<vmem>>, %arg2: memref<1x128xf32, #tpu.memory_space<vmem>>, %arg3: memref<1x128xi8, #tpu.memory_space<vmem>>) attributes {dimension_semantics = [#tpu.dimension_semantics<parallel>], iteration_bounds = array<i64: 1>, scalar_prefetch = 0 : i64, scratch_operands = 0 : i64, tpu.core_type = #tpu.core_type<tc>, window_params = [{transform_indices = @transform_0, window_bounds = array<i64: 2, 1, 128>}, {transform_indices = @transform_1, window_bounds = array<i64: 1, 128>}, {transform_indices = @transform_2, window_bounds = array<i64: 1, 128>}]} {
    %c0 = arith.constant 0 : index
    %c0_0 = arith.constant 0 : index
    %c0_1 = arith.constant 0 : index
    %0 = vector.load %arg1[%c0, %c0_0, %c0_1] : memref<2x1x128xf32, #tpu.memory_space<vmem>>, vector<1x1x128xf32>
    %1 = vector.shape_cast %0 : vector<1x1x128xf32> to vector<1x128xf32>
    %c1 = arith.constant 1 : index
    %c0_2 = arith.constant 0 : index
    %c0_3 = arith.constant 0 : index
    %2 = vector.load %arg1[%c1, %c0_2, %c0_3] : memref<2x1x128xf32, #tpu.memory_space<vmem>>, vector<1x1x128xf32>
    %3 = vector.shape_cast %2 : vector<1x1x128xf32> to vector<1x128xf32>
    %4 = arith.subf %3, %1 : vector<1x128xf32>
    %5 = arith.negf %4 : vector<1x128xf32>
    %6 = math.exp %5 : vector<1x128xf32>
    %cst = arith.constant 1.000000e+00 : f32
    %7 = vector.broadcast %cst : f32 to vector<1x128xf32>
    %8 = arith.addf %7, %6 : vector<1x128xf32>
    %9 = arith.divf %7, %8 : vector<1x128xf32>
    %c0_4 = arith.constant 0 : index
    %c0_5 = arith.constant 0 : index
    %10 = vector.load %arg2[%c0_4, %c0_5] : memref<1x128xf32, #tpu.memory_space<vmem>>, vector<1x128xf32>
    tpu.vector_store %arg2[%c0_4, %c0_5], %9 {strides = array<i32>} : memref<1x128xf32, #tpu.memory_space<vmem>>, vector<1x128xf32>,
    %11 = arith.cmpf one, %1, %1 : vector<1x128xf32>
    %12 = arith.cmpf one, %3, %3 : vector<1x128xf32>
    %cst_6 = arith.constant dense<true> : vector<1x128xi1>
    %13 = arith.xori %11, %cst_6 : vector<1x128xi1>
    %14 = arith.cmpf ogt, %3, %1 : vector<1x128xf32>
    %15 = arith.ori %12, %14 : vector<1x128xi1>
    %16 = arith.andi %13, %15 : vector<1x128xi1>
    %17 = arith.extui %16 : vector<1x128xi1> to vector<1x128xi8>
    %c0_7 = arith.constant 0 : index
    %c0_8 = arith.constant 0 : index
    %18 = vector.load %arg3[%c0_7, %c0_8] : memref<1x128xi8, #tpu.memory_space<vmem>>, vector<1x128xi8>
    tpu.vector_store %arg3[%c0_7, %c0_8], %17 {strides = array<i32>} : memref<1x128xi8, #tpu.memory_space<vmem>>, vector<1x128xi8>,
    return
  }
  func.func @transform_0(%arg0: i32) -> (i32, i32, i32) {
    %c0_i32 = arith.constant 0 : i32
    %c0_i32_0 = arith.constant 0 : i32
    %c0_i32_1 = arith.constant 0 : i32
    return %c0_i32, %arg0, %c0_i32_0 : i32, i32, i32
  }
  func.func @transform_1(%arg0: i32) -> (i32, i32) {
    %c0_i32 = arith.constant 0 : i32
    %c0_i32_0 = arith.constant 0 : i32
    return %arg0, %c0_i32 : i32, i32
  }
  func.func @transform_2(%arg0: i32) -> (i32, i32) {
    %c0_i32 = arith.constant 0 : i32
    %c0_i32_0 = arith.constant 0 : i32
    return %arg0, %c0_i32 : i32, i32
  }
}

</mosaic_0001>

<llo_original>
// kernel: test_head.1
$region0: #{test_head.1}
  #allocation0 [shape = 'u32[]', space=smem, size = 0x4, offset = 0x4, fixed_abs, tag = 'smem constant byte address 0x4 - core index']
  #allocation1 [shape = 'u32[72,128]{1,0:T(1,128)}', space=vmem, size = 0x9000, scoped, tag = 'internal scratch']
  %s0 = inlined_call_operand.vmem [shape: f32[2,1,128], index: 0, kind: input, shape index: {}]
  %s1 = inlined_call_operand.vmem [shape: f32[1,128], index: 1, kind: output, shape index: {0}]
  %s2 = inlined_call_operand.vmem [shape: s8[1,128], index: 2, kind: output, shape index: {1}]
  %3 = xla_tuple %s1, %s2
  %s4 = sld [smem:[#allocation0]]
  $region22: #{test_head.1} parent=0
    _
  %s6 = ssub.s32 1, %s4
  %s7 = scalar_select 0, %s6, %s4
  // Predicated region
  $region2: #{test_head.1} parent=0 // pred_check
    _
  $region3: #{test_head.1} parent=0 // pred_check_branch
    %9 = sbr.rel (0) target = $region5
  $region4: #{test_head.1} parent=0 // pred_region
    _
  $region5: #{test_head.1} parent=0 // pred_fallthru
    _
  %v12 = vld [vmem:[%s0] sm:$0x1]
  %s13 = scalar_lea.vmem %s0, 1
  %v14 = vld [vmem:[%s13] sm:$0x1]
  %v15 = vsub.f32 %v14, %v12
  %v16 = vxor.u32 %v15, 2147483648
  %v17 = vmul.f32 %v16, 1.442695
  %v18 = vpow.pop %v17
  %v19 = vadd.f32 %v18, 1.0
  %v20 = vrcp.pop %v19
  %v21 = vmul.f32 %v19, %v20
  %v22 = vsub.f32 1.0, %v21
  %v23 = vmul.f32 %v20, %v22
  %v24 = vadd.f32 %v20, %v23
  %vm25 = vweird.f32 %v19
  %vm26 = vweird.f32 %v20
  %vm27 = vmor %vm25, %vm26
  %v28 = vsel %vm27, %v20, %v24
  %v29 = vand.u32 2147483647, %v19
  %vm30 = vcmp.eq.f32.partialorder %v29, 8.507059e+37
  %v31 = vand.u32 %v19, 2147483648
  %v32 = vor.u32 1.1754944e-38, %v31
  %v33 = vsel %vm30, %v32, %v28
  %v34 = vmul.f32 1.0, %v33
  %35 = vst [vmem:[%s1] sm:$0x1] %v34
  %vm36 = vcmp.ne.f32.partialorder %v12, %v12
  %vm37 = vcmp.ne.f32.partialorder %v14, %v14
  %vm38 = vmxor %vm36, 1
  %vm39 = vcmp.gt.f32.partialorder %v14, %v12
  %vm40 = vmor %vm37, %vm39
  %vm41 = vmand %vm38, %vm40
  %v42 = vsel %vm41, 1, 0
  %v43 = vpack.c.b16 %v42, %v42
  %v44 = vpack.c.b8 %v43, %v43
  %vm45 = vnez %v44
  %v46 = vsel %vm45, 16843009, 0
  %vm47 = vcmask 1040384
  %vm48 = vsmask.f32 0
  %vm49 = vmand %vm47, %vm48
  %v50 = vld [vmem:[%s2] sm:$0x1]
  %v51 = vsel %vm49, %v46, %v50
  %52 = vst [vmem:[%s2] sm:$0x1] %v51
  // Predicated region
  $region6: #{test_head.1} parent=0 // pred_check
    _
  $region7: #{test_head.1} parent=0 // pred_check_branch
    %54 = sbr.rel (0) target = $region9
  $region8: #{test_head.1} parent=0 // pred_region
    _
  $region9: #{test_head.1} parent=0 // pred_fallthru
    _
  // Predicated region
  $region10: #{test_head.1} parent=0 // pred_check
    _
  $region11: #{test_head.1} parent=0 // pred_check_branch
    %56 = sbr.rel (0) target = $region13
  $region12: #{test_head.1} parent=0 // pred_region
    _
  $region13: #{test_head.1} parent=0 // pred_fallthru
    _
  // Predicated region
  $region14: #{test_head.1} parent=0 // pred_check
    _
  $region15: #{test_head.1} parent=0 // pred_check_branch
    %58 = sbr.rel (0) target = $region17
  $region16: #{test_head.1} parent=0 // pred_region
    _
  $region17: #{test_head.1} parent=0 // pred_fallthru
    _
  // Predicated region
  $region18: #{test_head.1} parent=0 // pred_check
    _
  $region19: #{test_head.1} parent=0 // pred_check_branch
    %60 = sbr.rel (0) target = $region21
  $region20: #{test_head.1} parent=0 // pred_region
    _
  $region21: #{test_head.1} parent=0 // pred_fallthru
    _

</llo_original>
